<compile_context>
chip_gen: v7x
topology: tpu7x:2x2x1
jax: 0.10.0
libtpu: 0.0.40
codegen_flags: <defaults>
</compile_context>

<pallas_src>
import functools

import jax
import jax.numpy as jnp
from jax.experimental import pallas as pl
from jax.experimental.pallas import tpu as pltpu


def _round_up(n, m):
    return ((n + m - 1) // m) * m


def _mlp_norm_kernel(x_ref, w1_ref, b1_ref, w2_ref, b2_ref,
                     z1_ref, z3_ref, zn_ref):
    """Full variant: also writes linear1/linear2 outputs (relu recomputed outside)."""
    x = x_ref[...]

    # Linear(input_dim, 64)
    z1 = jnp.dot(x, w1_ref[...], preferred_element_type=jnp.float32) + b1_ref[...]
    z1_ref[...] = z1

    # ReLU (kept in-register; not written back to HBM)
    z2 = jnp.maximum(z1, 0.0)

    # Linear(64, feature_dim)
    z3 = jnp.dot(z2, w2_ref[...], preferred_element_type=jnp.float32) + b2_ref[...]
    z3_ref[...] = z3

    # F.normalize(z3, dim=1): z3 / max(||z3||_2, 1e-12)
    # == z3 * rsqrt(max(sum(z3^2), 1e-24)); rsqrt runs on the EUP slot.
    ss = jnp.sum(z3 * z3, axis=1, keepdims=True)
    inv = jax.lax.rsqrt(jnp.maximum(ss, 1e-24))
    zn_ref[...] = z3 * inv


def _mlp_norm_lean_kernel(x_ref, w1_ref, b1_ref, w2_ref, b2_ref, zn_ref):
    """Lean variant: only the normalized output is written (min HBM store traffic)."""
    x = x_ref[...]
    z1 = jnp.dot(x, w1_ref[...], preferred_element_type=jnp.float32) + b1_ref[...]
    z2 = jnp.maximum(z1, 0.0)
    z3 = jnp.dot(z2, w2_ref[...], preferred_element_type=jnp.float32) + b2_ref[...]
    ss = jnp.sum(z3 * z3, axis=1, keepdims=True)
    inv = jax.lax.rsqrt(jnp.maximum(ss, 1e-24))
    zn_ref[...] = z3 * inv


def _build_call(B_pad, TB, D_in, hidden, feat, return_intermediates):
    grid = (B_pad // TB,)

    # x / outputs tile along batch; weights & biases use a constant index_map
    # (same block every step -> fetched once, stays resident in VMEM).
    x_spec = pl.BlockSpec((TB, D_in), lambda i: (i, 0))
    w1_spec = pl.BlockSpec((D_in, hidden), lambda i: (0, 0))
    b1_spec = pl.BlockSpec((1, hidden), lambda i: (0, 0))
    w2_spec = pl.BlockSpec((hidden, feat), lambda i: (0, 0))
    b2_spec = pl.BlockSpec((1, feat), lambda i: (0, 0))

    in_specs = [x_spec, w1_spec, b1_spec, w2_spec, b2_spec]

    if return_intermediates:
        kernel = _mlp_norm_kernel
        out_shape = (
            jax.ShapeDtypeStruct((B_pad, hidden), jnp.float32),  # linear1_output
            jax.ShapeDtypeStruct((B_pad, feat), jnp.float32),    # linear2_output
            jax.ShapeDtypeStruct((B_pad, feat), jnp.float32),    # normalized_output
        )
        out_specs = (
            pl.BlockSpec((TB, hidden), lambda i: (i, 0)),
            pl.BlockSpec((TB, feat), lambda i: (i, 0)),
            pl.BlockSpec((TB, feat), lambda i: (i, 0)),
        )
    else:
        kernel = _mlp_norm_lean_kernel
        out_shape = jax.ShapeDtypeStruct((B_pad, feat), jnp.float32)
        out_specs = pl.BlockSpec((TB, feat), lambda i: (i, 0))

    return pl.pallas_call(
        kernel,
        out_shape=out_shape,
        grid=grid,
        in_specs=in_specs,
        out_specs=out_specs,
        compiler_params=pltpu.CompilerParams(
            # Batch tiles are independent -> shard across TCs on v7x; no-op on v5e/v6e.
            dimension_semantics=("parallel",),
        ),
    )


@functools.partial(jax.jit, static_argnames=("block_b", "return_intermediates"))
def modified_network_forward(x, w1, b1, w2, b2, *, block_b=512,
                             return_intermediates=True):
    """x: (B, input_dim); w1: (input_dim, 64); b1: (1, 64);
    w2: (64, feature_dim); b2: (1, feature_dim).

    Returns (z, outputs) matching the PyTorch module's forward.
    """
    B, D_in = x.shape
    hidden = w1.shape[1]
    feat = w2.shape[1]

    # Tile the batch: TB capped at block_b (sized well within v7x's smaller VMEM),
    # rounded to the (8, lane) sublane granularity. Pad B up to a TB multiple;
    # zero pad rows normalize to zeros (no NaN) and are sliced away below.
    TB = min(block_b, _round_up(B, 8))
    B_pad = _round_up(B, TB)
    x_p = jnp.pad(x, ((0, B_pad - B), (0, 0))) if B_pad != B else x

    call = _build_call(B_pad, TB, D_in, hidden, feat, return_intermediates)

    if return_intermediates:
        z1, z3, zn = call(x_p, w1, b1, w2, b2)
        z1, z3, zn = z1[:B], z3[:B], zn[:B]
        outputs = {
            "linear1_output": z1,
            "relu_output": jnp.maximum(z1, 0.0),  # recomputed; not stored by kernel
            "linear2_output": z3,
            "normalized_output": zn,
        }
        return zn, outputs
    else:
        zn = call(x_p, w1, b1, w2, b2)[:B]
        return zn, {"normalized_output": zn}


def init_params(key, input_dim, feature_dim, hidden=64):
    """Deterministic kaiming_normal_ (fan_in, gain=sqrt(2)) weights, zero biases.
    Weights are stored as (in, out) = PyTorch weight.T."""
    k1, k2 = jax.random.split(key)
    std1 = (2.0 / input_dim) ** 0.5
    std2 = (2.0 / hidden) ** 0.5
    w1 = jax.random.normal(k1, (input_dim, hidden), jnp.float32) * std1
    b1 = jnp.zeros((1, hidden), jnp.float32)
    w2 = jax.random.normal(k2, (hidden, feature_dim), jnp.float32) * std2
    b2 = jnp.zeros((1, feature_dim), jnp.float32)
    return w1, b1, w2, b2


if __name__ == "__main__":
    input_dim = 32
    feature_dim = 16
    batch = 8

    key = jax.random.PRNGKey(0)
    kx, kp = jax.random.split(key)
    x = jax.random.normal(kx, (batch, input_dim), jnp.float32)
    w1, b1, w2, b2 = init_params(kp, input_dim, feature_dim)

    # Full path (all dict entries, matching the PyTorch forward).
    z, outputs = modified_network_forward(x, w1, b1, w2, b2)
    jax.block_until_ready(z)

    # Lean path (normalized output only; minimal HBM store traffic).
    z_lean, _ = modified_network_forward(x, w1, b1, w2, b2,
                                         return_intermediates=False)
    jax.block_until_ready(z_lean)

    # Pure-JAX reference check.
    z1_ref = x @ w1 + b1
    z2_ref = jnp.maximum(z1_ref, 0.0)
    z3_ref = z2_ref @ w2 + b2
    zn_ref = z3_ref / jnp.maximum(
        jnp.sqrt(jnp.sum(z3_ref * z3_ref, axis=1, keepdims=True)), 1e-12)

    assert jnp.allclose(outputs["linear1_output"], z1_ref, atol=1e-5)
    assert jnp.allclose(outputs["relu_output"], z2_ref, atol=1e-5)
    assert jnp.allclose(outputs["linear2_output"], z3_ref, atol=1e-5)
    assert jnp.allclose(outputs["normalized_output"], zn_ref, atol=1e-5)
    assert jnp.allclose(z, zn_ref, atol=1e-5)
    assert jnp.allclose(z_lean, zn_ref, atol=1e-5)

    print("KERNEL_OK")
</pallas_src>

<mosaic_0001>
module attributes {stable_mosaic.version = 11 : i64} {
  func.func @_mlp_norm_kernel(%arg0: i32, %arg1: memref<8x32xf32, #tpu.memory_space<vmem>>, %arg2: memref<32x64xf32, #tpu.memory_space<vmem>>, %arg3: memref<1x64xf32, #tpu.memory_space<vmem>>, %arg4: memref<64x16xf32, #tpu.memory_space<vmem>>, %arg5: memref<1x16xf32, #tpu.memory_space<vmem>>, %arg6: memref<8x64xf32, #tpu.memory_space<vmem>>, %arg7: memref<8x16xf32, #tpu.memory_space<vmem>>, %arg8: memref<8x16xf32, #tpu.memory_space<vmem>>) attributes {dimension_semantics = [#tpu.dimension_semantics<parallel>], iteration_bounds = array<i64: 1>, scalar_prefetch = 0 : i64, scratch_operands = 0 : i64, tpu.core_type = #tpu.core_type<tc>, window_params = [{transform_indices = @transform_0, window_bounds = array<i64: 8, 32>}, {pipeline_mode = #tpu.pipeline_mode<synchronous>, transform_indices = @transform_1, window_bounds = array<i64: 32, 64>}, {pipeline_mode = #tpu.pipeline_mode<synchronous>, transform_indices = @transform_2, window_bounds = array<i64: 1, 64>}, {pipeline_mode = #tpu.pipeline_mode<synchronous>, transform_indices = @transform_3, window_bounds = array<i64: 64, 16>}, {pipeline_mode = #tpu.pipeline_mode<synchronous>, transform_indices = @transform_4, window_bounds = array<i64: 1, 16>}, {transform_indices = @transform_5, window_bounds = array<i64: 8, 64>}, {transform_indices = @transform_6, window_bounds = array<i64: 8, 16>}, {transform_indices = @transform_7, window_bounds = array<i64: 8, 16>}]} {
    %c0 = arith.constant 0 : index
    %c0_0 = arith.constant 0 : index
    %0 = vector.load %arg1[%c0, %c0_0] : memref<8x32xf32, #tpu.memory_space<vmem>>, vector<8x32xf32>
    %c0_1 = arith.constant 0 : index
    %c0_2 = arith.constant 0 : index
    %1 = vector.load %arg2[%c0_1, %c0_2] : memref<32x64xf32, #tpu.memory_space<vmem>>, vector<32x64xf32>
    %cst = arith.constant dense<0.000000e+00> : vector<8x64xf32>
    %2 = tpu.matmul %0, %1, %cst {dimension_numbers = #tpu.dot_dimension_numbers<[1], [0], [0], [1], [0, 0, 1, 1], [], []>} : vector<8x32xf32>, vector<32x64xf32>, vector<8x64xf32> -> vector<8x64xf32>
    %c0_3 = arith.constant 0 : index
    %c0_4 = arith.constant 0 : index
    %3 = vector.load %arg3[%c0_3, %c0_4] : memref<1x64xf32, #tpu.memory_space<vmem>>, vector<1x64xf32>
    %4 = vector.broadcast %3 : vector<1x64xf32> to vector<8x64xf32>
    %5 = arith.addf %2, %4 : vector<8x64xf32>
    %c0_5 = arith.constant 0 : index
    %c0_6 = arith.constant 0 : index
    %6 = vector.load %arg6[%c0_5, %c0_6] : memref<8x64xf32, #tpu.memory_space<vmem>>, vector<8x64xf32>
    tpu.vector_store %arg6[%c0_5, %c0_6], %5 {strides = array<i32>} : memref<8x64xf32, #tpu.memory_space<vmem>>, vector<8x64xf32>,
    %cst_7 = arith.constant 0.000000e+00 : f32
    %7 = vector.broadcast %cst_7 : f32 to vector<8x64xf32>
    %8 = arith.maximumf %5, %7 : vector<8x64xf32>
    %c0_8 = arith.constant 0 : index
    %c0_9 = arith.constant 0 : index
    %9 = vector.load %arg4[%c0_8, %c0_9] : memref<64x16xf32, #tpu.memory_space<vmem>>, vector<64x16xf32>
    %cst_10 = arith.constant dense<0.000000e+00> : vector<8x16xf32>
    %10 = tpu.matmul %8, %9, %cst_10 {dimension_numbers = #tpu.dot_dimension_numbers<[1], [0], [0], [1], [0, 0, 1, 1], [], []>} : vector<8x64xf32>, vector<64x16xf32>, vector<8x16xf32> -> vector<8x16xf32>
    %c0_11 = arith.constant 0 : index
    %c0_12 = arith.constant 0 : index
    %11 = vector.load %arg5[%c0_11, %c0_12] : memref<1x16xf32, #tpu.memory_space<vmem>>, vector<1x16xf32>
    %12 = vector.broadcast %11 : vector<1x16xf32> to vector<8x16xf32>
    %13 = arith.addf %10, %12 : vector<8x16xf32>
    %c0_13 = arith.constant 0 : index
    %c0_14 = arith.constant 0 : index
    %14 = vector.load %arg7[%c0_13, %c0_14] : memref<8x16xf32, #tpu.memory_space<vmem>>, vector<8x16xf32>
    tpu.vector_store %arg7[%c0_13, %c0_14], %13 {strides = array<i32>} : memref<8x16xf32, #tpu.memory_space<vmem>>, vector<8x16xf32>,
    %15 = arith.mulf %13, %13 : vector<8x16xf32>
    %cst_15 = arith.constant dense<0.000000e+00> : vector<8xf32>
    %16 = vector.multi_reduction <add>, %15, %cst_15 [1] : vector<8x16xf32> to vector<8xf32>
    %17 = vector.shape_cast %16 : vector<8xf32> to vector<8x1xf32>
    %cst_16 = arith.constant 1.000000e-24 : f32
    %18 = vector.broadcast %cst_16 : f32 to vector<8x1xf32>
    %19 = arith.maximumf %17, %18 : vector<8x1xf32>
    %20 = math.rsqrt %19 : vector<8x1xf32>
    %21 = vector.broadcast %20 : vector<8x1xf32> to vector<8x16xf32>
    %22 = arith.mulf %13, %21 : vector<8x16xf32>
    %c0_17 = arith.constant 0 : index
    %c0_18 = arith.constant 0 : index
    %23 = vector.load %arg8[%c0_17, %c0_18] : memref<8x16xf32, #tpu.memory_space<vmem>>, vector<8x16xf32>
    tpu.vector_store %arg8[%c0_17, %c0_18], %22 {strides = array<i32>} : memref<8x16xf32, #tpu.memory_space<vmem>>, vector<8x16xf32>,
    return
  }
  func.func @transform_0(%arg0: i32) -> (i32, i32) {
    %c0_i32 = arith.constant 0 : i32
    %c0_i32_0 = arith.constant 0 : i32
    return %arg0, %c0_i32 : i32, i32
  }
  func.func @transform_1(%arg0: i32) -> (i32, i32) {
    %c0_i32 = arith.constant 0 : i32
    %c0_i32_0 = arith.constant 0 : i32
    %c0_i32_1 = arith.constant 0 : i32
    return %c0_i32, %c0_i32_0 : i32, i32
  }
  func.func @transform_2(%arg0: i32) -> (i32, i32) {
    %c0_i32 = arith.constant 0 : i32
    %c0_i32_0 = arith.constant 0 : i32
    %c0_i32_1 = arith.constant 0 : i32
    return %c0_i32, %c0_i32_0 : i32, i32
  }
  func.func @transform_3(%arg0: i32) -> (i32, i32) {
    %c0_i32 = arith.constant 0 : i32
    %c0_i32_0 = arith.constant 0 : i32
    %c0_i32_1 = arith.constant 0 : i32
    return %c0_i32, %c0_i32_0 : i32, i32
  }
  func.func @transform_4(%arg0: i32) -> (i32, i32) {
    %c0_i32 = arith.constant 0 : i32
    %c0_i32_0 = arith.constant 0 : i32
    %c0_i32_1 = arith.constant 0 : i32
    return %c0_i32, %c0_i32_0 : i32, i32
  }
  func.func @transform_5(%arg0: i32) -> (i32, i32) {
    %c0_i32 = arith.constant 0 : i32
    %c0_i32_0 = arith.constant 0 : i32
    return %arg0, %c0_i32 : i32, i32
  }
  func.func @transform_6(%arg0: i32) -> (i32, i32) {
    %c0_i32 = arith.constant 0 : i32
    %c0_i32_0 = arith.constant 0 : i32
    return %arg0, %c0_i32 : i32, i32
  }
  func.func @transform_7(%arg0: i32) -> (i32, i32) {
    %c0_i32 = arith.constant 0 : i32
    %c0_i32_0 = arith.constant 0 : i32
    return %arg0, %c0_i32 : i32, i32
  }
}

</mosaic_0001>

<llo_original>
// kernel: modified_network_forward.1
$region0: #{modified_network_forward.1}
  #allocation0 [shape = 'u32[]', space=smem, size = 0x4, offset = 0x4, fixed_abs, tag = 'smem constant byte address 0x4 - core index']
  #allocation1 [shape = 'u32[144,128]{1,0:T(1,128)}', space=vmem, size = 0x12000, scoped, tag = 'internal scratch']
  %s0 = inlined_call_operand.vmem [shape: f32[8,32], index: 0, kind: input, shape index: {}]
  %s1 = inlined_call_operand.vmem [shape: f32[32,64], index: 1, kind: input, shape index: {}]
  %s2 = inlined_call_operand.vmem [shape: f32[1,64], index: 2, kind: input, shape index: {}]
  %s3 = inlined_call_operand.vmem [shape: f32[64,16], index: 3, kind: input, shape index: {}]
  %s4 = inlined_call_operand.vmem [shape: f32[1,16], index: 4, kind: input, shape index: {}]
  %s5 = inlined_call_operand.vmem [shape: f32[8,64], index: 5, kind: output, shape index: {0}]
  %s6 = inlined_call_operand.hbm [shape: f32[8,16], index: 6, kind: output, shape index: {1}]
  %s7 = inlined_call_operand.vmem [shape: f32[8,16], index: 7, kind: output, shape index: {2}]
  %8 = xla_tuple %s5, %s6, %s7
  %s9 = sld [smem:[#allocation0]]
  $region46: #{modified_network_forward.1} parent=0
    _
  %s11 = ssub.s32 1, %s9
  %s12 = scalar_select 0, %s11, %s9
  $region1: #{modified_network_forward.1} parent=0
    #allocation2 [shape = 'u8[4096]{0}', space=vmem, size = 0x1000, scoped, tag = 'output window, operand 1, single buffered']
    #allocation3 [shape = 's32[1]{0}', space=sflag, size = 0x4, scoped, tag = 'scoped memory for modified_network_forward.1']
    %13 = vsyncpa [#allocation3], 0
    // Predicated region
    $region2: #{modified_network_forward.1} parent=1 // pred_check
      _
    $region3: #{modified_network_forward.1} parent=1 // pred_check_branch
      %15 = sbr.rel (0) target = $region5
    $region4: #{modified_network_forward.1} parent=1 // pred_region
      _
    $region5: #{modified_network_forward.1} parent=1 // pred_fallthru
      _
    // Predicated region
    $region6: #{modified_network_forward.1} parent=1 // pred_check
      _
    $region7: #{modified_network_forward.1} parent=1 // pred_check_branch
      %17 = sbr.rel (0) target = $region9
    $region8: #{modified_network_forward.1} parent=1 // pred_region
      _
    $region9: #{modified_network_forward.1} parent=1 // pred_fallthru
      _
    // Predicated region
    $region10: #{modified_network_forward.1} parent=1 // pred_check
      _
    $region11: #{modified_network_forward.1} parent=1 // pred_check_branch
      %19 = sbr.rel (0) target = $region13
    $region12: #{modified_network_forward.1} parent=1 // pred_region
      _
    $region13: #{modified_network_forward.1} parent=1 // pred_fallthru
      _
    // Predicated region
    $region14: #{modified_network_forward.1} parent=1 // pred_check
      _
    $region15: #{modified_network_forward.1} parent=1 // pred_check_branch
      %21 = sbr.rel (0) target = $region17
    $region16: #{modified_network_forward.1} parent=1 // pred_region
      _
    $region17: #{modified_network_forward.1} parent=1 // pred_fallthru
      _
    // Predicated region
    $region18: #{modified_network_forward.1} parent=1 // pred_check
      _
    $region19: #{modified_network_forward.1} parent=1 // pred_check_branch
      %23 = sbr.rel (0) target = $region21
    $region20: #{modified_network_forward.1} parent=1 // pred_region
      _
    $region21: #{modified_network_forward.1} parent=1 // pred_fallthru
      _
    %v24 = vld [vmem:[%s0] sm:$0xff]
    %v25 = vld [vmem:[%s1] sm:$0xff]
    %v26 = vld [vmem:[%s1 + $0x8] sm:$0xff]
    %v27 = vld [vmem:[%s1 + $0x10] sm:$0xff]
    %v28 = vld [vmem:[%s1 + $0x18] sm:$0xff]
    %v29 = vld [vmem:[%s2] sm:$0x1]
    %v31 = vlaneseq
    %v32 = vshrl.u32 %v31, 7
    %v33 = vsub.s32 0, %v32
    %v34 = vrot.slane %v29, %v33
    %vm36 = vcmask 261120
    %v38 = vsel %vm36, %v24, 0
    %40 = vmatprep.subr.mxu0 0.0
    %41 = vmatpush1.msra.mxu0 %v25
    %42 = vmatprep.subr.mxu0 0.0
    %43 = vmatpush1.msra.mxu0 %v26
    %44 = vmatprep.subr.mxu0 0.0
    %45 = vmatpush1.msra.mxu0 %v27
    %46 = vmatprep.subr.mxu0 0.0
    %47 = vmatpush1.msra.mxu0 %v28
    %48 = vmatprep.subr.mxu0 0.0
    %49 = vmatpush1.msra.mxu0 0.0
    %50 = vmatprep.subr.mxu0 0.0
    %51 = vmatpush1.msra.mxu0 0.0
    %52 = vmatprep.subr.mxu0 0.0
    %53 = vmatpush1.msra.mxu0 0.0
    %54 = vmatprep.subr.mxu0 0.0
    %55 = vmatpush1.msra.mxu0 0.0
    %56 = vmatprep.subr.mxu0 0.0
    %57 = vmatpush1.msra.mxu0 0.0
    %58 = vmatprep.subr.mxu0 0.0
    %59 = vmatpush1.msra.mxu0 0.0
    %60 = vmatprep.subr.mxu0 0.0
    %61 = vmatpush1.msra.mxu0 0.0
    %62 = vmatprep.subr.mxu0 0.0
    %63 = vmatpush1.msra.mxu0 0.0
    %64 = vmatprep.subr.mxu0 0.0
    %65 = vmatpush1.msra.mxu0 0.0
    %66 = vmatprep.subr.mxu0 0.0
    %67 = vmatpush1.msra.mxu0 0.0
    %68 = vmatprep.subr.mxu0 0.0
    %69 = vmatpush1.msra.mxu0 0.0
    %70 = vmatprep.subr.mxu0 0.0
    %71 = vmatpush1.msra.mxu0 0.0
    %72 = vmatprep.subr.mxu0 0.0
    %73 = vmatpush1.msra.mxu0 0.0
    %74 = vmatprep.subr.mxu0 0.0
    %75 = vmatpush1.msra.mxu0 0.0
    %76 = vmatprep.subr.mxu0 0.0
    %77 = vmatpush1.msra.mxu0 0.0
    %78 = vmatprep.subr.mxu0 0.0
    %79 = vmatpush1.msra.mxu0 0.0
    %80 = vmatprep.subr.mxu0 0.0
    %81 = vmatpush1.msra.mxu0 0.0
    %82 = vmatprep.subr.mxu0 0.0
    %83 = vmatpush1.msra.mxu0 0.0
    %84 = vmatprep.subr.mxu0 0.0
    %85 = vmatpush1.msra.mxu0 0.0
    %86 = vmatprep.subr.mxu0 0.0
    %87 = vmatpush1.msra.mxu0 0.0
    %88 = vmatprep.subr.mxu0 0.0
    %89 = vmatpush1.msra.mxu0 0.0
    %90 = vmatprep.subr.mxu0 0.0
    %91 = vmatpush1.msra.mxu0 0.0
    %92 = vmatprep.subr.mxu0 0.0
    %93 = vmatpush1.msra.mxu0 0.0
    %94 = vmatprep.subr.mxu0 0.0
    %95 = vmatpush1.msra.mxu0 0.0
    %96 = vmatprep.subr.mxu0 0.0
    %97 = vmatpush1.msra.mxu0 0.0
    %98 = vmatprep.subr.mxu0 0.0
    %99 = vmatpush1.msra.mxu0 0.0
    %100 = vmatprep.subr.mxu0 0.0
    %101 = vmatpush1.msra.mxu0 0.0
    %102 = vmatprep.subr.mxu0 0.0
    %103 = vmatpush1.msra.mxu0 0.0
    %104 = vmatprep.mubr.f32.mxu0 0.0
    %105 = vmatmul.mubr.f32.gmra.mrb[0].mxu0 %v38
    %v106 = vpop.f32.mrb[0].mxu0
    %v107 = vadd.f32 %v34, %v106
    %v108 = vpop.f32.mrb[0].mxu0
    %109 = vdwg.mxu0
    %vm110 = vcmask 523264
    %111 = vst.msk [vmem:[%s5] sm:$0xff] %vm110, %v107
    %v112 = vmax.f32 %v107, 0.0
    %v113 = vld [vmem:[%s3] sm:$0xff]
    %v114 = vld [vmem:[%s3 + $0x8] sm:$0xff]
    %v115 = vld [vmem:[%s3 + $0x10] sm:$0xff]
    %v116 = vld [vmem:[%s3 + $0x18] sm:$0xff]
    %v117 = vld [vmem:[%s3 + $0x20] sm:$0xff]
    %v118 = vld [vmem:[%s3 + $0x28] sm:$0xff]
    %v119 = vld [vmem:[%s3 + $0x30] sm:$0xff]
    %v120 = vld [vmem:[%s3 + $0x38] sm:$0xff]
    %v121 = vld [vmem:[%s4] sm:$0x1]
    %v123 = vlaneseq
    %v124 = vshrl.u32 %v123, 7
    %v125 = vsub.s32 0, %v124
    %v126 = vrot.slane %v121, %v125
    %v129 = vsel %vm110, %v112, 0
    %131 = vmatprep.subr.mxu0 0.0
    %132 = vmatpush1.msra.mxu0 %v113
    %133 = vmatprep.subr.mxu0 0.0
    %134 = vmatpush1.msra.mxu0 %v114
    %135 = vmatprep.subr.mxu0 0.0
    %136 = vmatpush1.msra.mxu0 %v115
    %137 = vmatprep.subr.mxu0 0.0
    %138 = vmatpush1.msra.mxu0 %v116
    %139 = vmatprep.subr.mxu0 0.0
    %140 = vmatpush1.msra.mxu0 %v117
    %141 = vmatprep.subr.mxu0 0.0
    %142 = vmatpush1.msra.mxu0 %v118
    %143 = vmatprep.subr.mxu0 0.0
    %144 = vmatpush1.msra.mxu0 %v119
    %145 = vmatprep.subr.mxu0 0.0
    %146 = vmatpush1.msra.mxu0 %v120
    %147 = vmatprep.subr.mxu0 0.0
    %148 = vmatpush1.msra.mxu0 0.0
    %149 = vmatprep.subr.mxu0 0.0
    %150 = vmatpush1.msra.mxu0 0.0
    %151 = vmatprep.subr.mxu0 0.0
    %152 = vmatpush1.msra.mxu0 0.0
    %153 = vmatprep.subr.mxu0 0.0
    %154 = vmatpush1.msra.mxu0 0.0
    %155 = vmatprep.subr.mxu0 0.0
    %156 = vmatpush1.msra.mxu0 0.0
    %157 = vmatprep.subr.mxu0 0.0
    %158 = vmatpush1.msra.mxu0 0.0
    %159 = vmatprep.subr.mxu0 0.0
    %160 = vmatpush1.msra.mxu0 0.0
    %161 = vmatprep.subr.mxu0 0.0
    %162 = vmatpush1.msra.mxu0 0.0
    %163 = vmatprep.subr.mxu0 0.0
    %164 = vmatpush1.msra.mxu0 0.0
    %165 = vmatprep.subr.mxu0 0.0
    %166 = vmatpush1.msra.mxu0 0.0
    %167 = vmatprep.subr.mxu0 0.0
    %168 = vmatpush1.msra.mxu0 0.0
    %169 = vmatprep.subr.mxu0 0.0
    %170 = vmatpush1.msra.mxu0 0.0
    %171 = vmatprep.subr.mxu0 0.0
    %172 = vmatpush1.msra.mxu0 0.0
    %173 = vmatprep.subr.mxu0 0.0
    %174 = vmatpush1.msra.mxu0 0.0
    %175 = vmatprep.subr.mxu0 0.0
    %176 = vmatpush1.msra.mxu0 0.0
    %177 = vmatprep.subr.mxu0 0.0
    %178 = vmatpush1.msra.mxu0 0.0
    %179 = vmatprep.subr.mxu0 0.0
    %180 = vmatpush1.msra.mxu0 0.0
    %181 = vmatprep.subr.mxu0 0.0
    %182 = vmatpush1.msra.mxu0 0.0
    %183 = vmatprep.subr.mxu0 0.0
    %184 = vmatpush1.msra.mxu0 0.0
    %185 = vmatprep.subr.mxu0 0.0
    %186 = vmatpush1.msra.mxu0 0.0
    %187 = vmatprep.subr.mxu0 0.0
    %188 = vmatpush1.msra.mxu0 0.0
    %189 = vmatprep.subr.mxu0 0.0
    %190 = vmatpush1.msra.mxu0 0.0
    %191 = vmatprep.subr.mxu0 0.0
    %192 = vmatpush1.msra.mxu0 0.0
    %193 = vmatprep.subr.mxu0 0.0
    %194 = vmatpush1.msra.mxu0 0.0
    %195 = vmatprep.mubr.f32.mxu0 0.0
    %196 = vmatmul.mubr.f32.gmra.mrb[0].mxu0 %v129
    %v197 = vpop.f32.mrb[0].mxu0
    %v198 = vadd.f32 %v126, %v197
    %v199 = vpop.f32.mrb[0].mxu0
    %200 = vdwg.mxu0
    %vm201 = vcmask 130048
    %202 = vst.msk [vmem:[#allocation2] sm:$0xff] %vm201, %v198
    %v203 = vmul.f32 %v198, %v198
    %v204 = vsel %vm201, %v203, 0.0
    %205 = vadd.xlane.f32.xlu0 %v204
    %v206 = vpop.xlane.xlu0 %205
    %v207 = vmax.f32 %v206, 1e-24
    %v208 = vrsqrt.pop %v207
    %v209 = vmul.f32 %v198, %v208
    %210 = vst.msk [vmem:[%s7] sm:$0xff] %vm201, %v209
    // Predicated region
    $region22: #{modified_network_forward.1} parent=1 // pred_check
      _
    $region23: #{modified_network_forward.1} parent=1 // pred_check_branch
      %212 = sbr.rel (0) target = $region25
    $region24: #{modified_network_forward.1} parent=1 // pred_region
      _
    $region25: #{modified_network_forward.1} parent=1 // pred_fallthru
      _
    // Predicated region
    $region26: #{modified_network_forward.1} parent=1 // pred_check
      _
    $region27: #{modified_network_forward.1} parent=1 // pred_check_branch
      %214 = sbr.rel (0) target = $region29
    $region28: #{modified_network_forward.1} parent=1 // pred_region
      %s216 = ssub.s32 128, 128
      %217 = vsyncadd [#allocation3], %s216
      %s219 = sshll.u32 [#allocation2], 4
      %s220 = int_to_ptr.vmem [resolvable:$true] %s219
      %222 = dma.vmem_to_hbm [thread:$0]  %s220, 128, %s6, [#allocation3]
    $region29: #{modified_network_forward.1} parent=1 // pred_fallthru
      _
    // Predicated region
    $region30: #{modified_network_forward.1} parent=1 // pred_check
      _
    $region31: #{modified_network_forward.1} parent=1 // pred_check_branch
      %224 = sbr.rel (0) target = $region33
    $region32: #{modified_network_forward.1} parent=1 // pred_region
      _
    $region33: #{modified_network_forward.1} parent=1 // pred_fallthru
      _
    // Predicated region
    $region34: #{modified_network_forward.1} parent=1 // pred_check
      _
    $region35: #{modified_network_forward.1} parent=1 // pred_check_branch
      %226 = sbr.rel (0) target = $region37
    $region36: #{modified_network_forward.1} parent=1 // pred_region
      _
    $region37: #{modified_network_forward.1} parent=1 // pred_fallthru
      _
    // Predicated region
    $region38: #{modified_network_forward.1} parent=1 // pred_check
      _
    $region39: #{modified_network_forward.1} parent=1 // pred_check_branch
      %228 = sbr.rel (0) target = $region41
    $region40: #{modified_network_forward.1} parent=1 // pred_region
      %229 = dma.done [#allocation3], 128
    $region41: #{modified_network_forward.1} parent=1 // pred_fallthru
      _
    // Predicated region
    $region42: #{modified_network_forward.1} parent=1 // pred_check
      _
    $region43: #{modified_network_forward.1} parent=1 // pred_check_branch
      %231 = sbr.rel (0) target = $region45
    $region44: #{modified_network_forward.1} parent=1 // pred_region
      _
    $region45: #{modified_network_forward.1} parent=1 // pred_fallthru
      _
    %232 = vsyncpa [#allocation3], 1

</llo_original>
